<compile_context>
chip_gen: v7x
topology: tpu7x:2x2x1
jax: 0.10.0
libtpu: 0.0.40
codegen_flags: <defaults>
</compile_context>

<pallas_src>
import functools

import jax
import jax.numpy as jnp
from jax.experimental import pallas as pl
from jax.experimental.pallas import tpu as pltpu


def _interp_matrix(out_size: int, in_size: int):
    """Row-stochastic (out_size, in_size) f32 matrix M such that M @ v is 1-D linear
    interpolation of v with align_corners=True (PyTorch bilinear semantics)."""
    idx = jnp.arange(out_size, dtype=jnp.float32)
    if out_size > 1:
        src = idx * (in_size - 1) / (out_size - 1)
    else:
        src = jnp.zeros((out_size,), jnp.float32)
    i0 = jnp.clip(jnp.floor(src).astype(jnp.int32), 0, in_size - 1)
    i1 = jnp.clip(i0 + 1, 0, in_size - 1)
    w = src - i0.astype(jnp.float32)
    rows = jnp.arange(out_size)
    m = jnp.zeros((out_size, in_size), jnp.float32)
    m = m.at[rows, i0].add(1.0 - w)
    m = m.at[rows, i1].add(w)
    return m


def _pick_tc(c_x, h_in, w_in, h_out, w_out, *, budget_bytes=10 << 20, max_tc=64):
    """Largest channel-block TC that (a) divides C, (b) keeps the merged (TC*H) block
    rows 8-aligned, and (c) fits a conservative per-step VMEM budget (double-buffered
    in/out blocks + intermediates), so it is safe on v7x's 64 MiB VMEM too."""
    per_c = (3 * h_in * w_in + 3 * h_out * w_out + 2 * h_in * w_out) * 4
    cap = max(1, min(c_x, max_tc, budget_bytes // max(per_c, 1)))
    for tc in range(cap, 0, -1):
        if c_x % tc == 0 and (tc * h_in) % 8 == 0 and (tc * h_out) % 8 == 0:
            return tc
    # Full-channel block is always layout-legal (block dim == full array dim).
    return c_x


def _transition_up_kernel(x_ref, wy_ref, wxt_ref, out_ref, *, tc, h_in, h_out):
    # Block shapes (channels merged into rows -> dense contiguous DMA slabs):
    #   x_ref:   (1, TC*H_in,  W_in)
    #   out_ref: (1, TC*H_out, W_out)
    #   wy_ref:  (H_out, H_in)      wxt_ref: (W_in, W_out)     (f32 constants)
    x_blk = x_ref[0].astype(jnp.float32)                         # (TC*H_in, W_in)

    # Width (lane) interpolation for ALL TC channels in one MXU matmul.
    t = jnp.dot(x_blk, wxt_ref[...],
                preferred_element_type=jnp.float32)              # (TC*H_in, W_out)

    # Height (row) interpolation per channel; static unroll of small MXU matmuls
    # that hide under the block DMAs of this memory-bound kernel.
    for c in range(tc):
        t_c = t[c * h_in:(c + 1) * h_in, :]                      # (H_in, W_out)
        o_c = jnp.dot(wy_ref[...], t_c,
                      preferred_element_type=jnp.float32)        # (H_out, W_out)
        out_ref[0, c * h_out:(c + 1) * h_out, :] = o_c.astype(out_ref.dtype)


def transition_up(x, skip, concat=True):
    """Pallas equivalent of TransitionUp.forward."""
    n, c_x, h_in, w_in = x.shape
    n2, _, h_out, w_out = skip.shape
    assert n == n2, "batch mismatch"

    # Interpolation weights stay in float32 regardless of x.dtype.
    wy = _interp_matrix(h_out, h_in)              # (H_out, H_in)
    wxt = _interp_matrix(w_out, w_in).T           # (W_in, W_out)

    tc = _pick_tc(c_x, h_in, w_in, h_out, w_out)
    n_cb = c_x // tc

    # Merge channels into the row axis: free reshape, dense contiguous blocks.
    x_m = x.reshape(n, c_x * h_in, w_in)

    kernel = functools.partial(_transition_up_kernel, tc=tc, h_in=h_in, h_out=h_out)

    up = pl.pallas_call(
        kernel,
        out_shape=jax.ShapeDtypeStruct((n, c_x * h_out, w_out), x.dtype),
        grid_spec=pltpu.PrefetchScalarGridSpec(
            num_scalar_prefetch=0,
            grid=(n, n_cb),
            in_specs=[
                pl.BlockSpec((1, tc * h_in, w_in), lambda b, cb: (b, cb, 0)),
                pl.BlockSpec((h_out, h_in), lambda b, cb: (0, 0)),
                pl.BlockSpec((w_in, w_out), lambda b, cb: (0, 0)),
            ],
            out_specs=pl.BlockSpec((1, tc * h_out, w_out), lambda b, cb: (b, cb, 0)),
        ),
        compiler_params=pltpu.CompilerParams(
            # Both grid axes are independent -> shard across v7x's two TensorCores.
            dimension_semantics=("parallel", "parallel"),
            vmem_limit_bytes=32 * 1024 * 1024,
        ),
    )(x_m, wy, wxt)

    up = up.reshape(n, c_x, h_out, w_out)
    if concat:
        # Skip-concat is a plain bandwidth-bound copy; leave it to XLA.
        return jnp.concatenate([up, skip], axis=1)
    return up


def _reference(x, skip, concat=True):
    """Plain-JAX reference: separable bilinear interp (align_corners=True)."""
    _, _, h_in, w_in = x.shape
    _, _, h_out, w_out = skip.shape
    wy = _interp_matrix(h_out, h_in)
    wx = _interp_matrix(w_out, w_in)
    up = jnp.einsum("oh,nchw->ncow", wy, x.astype(jnp.float32))
    up = jnp.einsum("pw,ncow->ncop", wx, up).astype(x.dtype)
    if concat:
        return jnp.concatenate([up, skip], axis=1)
    return up


if __name__ == "__main__":
    key = jax.random.PRNGKey(0)
    k1, k2, k3, k4 = jax.random.split(key, 4)

    # Case 1: tiny shapes (single channel block per batch element).
    x1 = jax.random.normal(k1, (2, 4, 8, 8), dtype=jnp.float32)
    s1 = jax.random.normal(k2, (2, 3, 16, 16), dtype=jnp.float32)
    out1 = jax.block_until_ready(transition_up(x1, s1, concat=True))
    ref1 = _reference(x1, s1, concat=True)
    assert out1.shape == (2, 7, 16, 16), out1.shape
    assert jnp.allclose(out1, ref1, atol=1e-5, rtol=1e-5), "case 1 mismatch"

    # concat=False path.
    out1b = jax.block_until_ready(transition_up(x1, s1, concat=False))
    ref1b = _reference(x1, s1, concat=False)
    assert jnp.allclose(out1b, ref1b, atol=1e-5, rtol=1e-5), "case 1b mismatch"

    # Case 2: more channels than one block (exercises the channel-blocked grid)
    # and spatial sizes that are not multiples of 8.
    x2 = jax.random.normal(k3, (1, 80, 12, 12), dtype=jnp.float32)
    s2 = jax.random.normal(k4, (1, 5, 24, 24), dtype=jnp.float32)
    out2 = jax.block_until_ready(transition_up(x2, s2, concat=True))
    ref2 = _reference(x2, s2, concat=True)
    assert out2.shape == (1, 85, 24, 24), out2.shape
    assert jnp.allclose(out2, ref2, atol=1e-5, rtol=1e-5), "case 2 mismatch"

    print("KERNEL_OK")
</pallas_src>

<mosaic_0001>
module attributes {stable_mosaic.version = 11 : i64} {
  func.func @_transition_up_kernel(%arg0: i32, %arg1: i32, %arg2: memref<1x32x8xf32, #tpu.memory_space<vmem>>, %arg3: memref<16x8xf32, #tpu.memory_space<vmem>>, %arg4: memref<8x16xf32, #tpu.memory_space<vmem>>, %arg5: memref<1x64x16xf32, #tpu.memory_space<vmem>>) attributes {dimension_semantics = [#tpu.dimension_semantics<parallel>, #tpu.dimension_semantics<parallel>], iteration_bounds = array<i64: 2, 1>, scalar_prefetch = 0 : i64, scratch_operands = 0 : i64, tpu.core_type = #tpu.core_type<tc>, window_params = [{transform_indices = @transform_0, window_bounds = array<i64: 1, 32, 8>}, {pipeline_mode = #tpu.pipeline_mode<synchronous>, transform_indices = @transform_1, window_bounds = array<i64: 16, 8>}, {pipeline_mode = #tpu.pipeline_mode<synchronous>, transform_indices = @transform_2, window_bounds = array<i64: 8, 16>}, {transform_indices = @transform_3, window_bounds = array<i64: 1, 64, 16>}]} {
    %c0 = arith.constant 0 : index
    %c0_0 = arith.constant 0 : index
    %c0_1 = arith.constant 0 : index
    %0 = vector.load %arg2[%c0, %c0_0, %c0_1] : memref<1x32x8xf32, #tpu.memory_space<vmem>>, vector<1x32x8xf32>
    %1 = vector.shape_cast %0 : vector<1x32x8xf32> to vector<32x8xf32>
    %c0_2 = arith.constant 0 : index
    %c0_3 = arith.constant 0 : index
    %2 = vector.load %arg4[%c0_2, %c0_3] : memref<8x16xf32, #tpu.memory_space<vmem>>, vector<8x16xf32>
    %cst = arith.constant dense<0.000000e+00> : vector<32x16xf32>
    %3 = tpu.matmul %1, %2, %cst {dimension_numbers = #tpu.dot_dimension_numbers<[1], [0], [0], [1], [0, 0, 1, 1], [], []>} : vector<32x8xf32>, vector<8x16xf32>, vector<32x16xf32> -> vector<32x16xf32>
    %4 = vector.extract_strided_slice %3 {offsets = [0, 0], sizes = [8, 16], strides = [1, 1]} : vector<32x16xf32> to vector<8x16xf32>
    %c0_4 = arith.constant 0 : index
    %c0_5 = arith.constant 0 : index
    %5 = vector.load %arg3[%c0_4, %c0_5] : memref<16x8xf32, #tpu.memory_space<vmem>>, vector<16x8xf32>
    %cst_6 = arith.constant dense<0.000000e+00> : vector<16x16xf32>
    %6 = tpu.matmul %5, %4, %cst_6 {dimension_numbers = #tpu.dot_dimension_numbers<[1], [0], [0], [1], [0, 0, 1, 1], [], []>} : vector<16x8xf32>, vector<8x16xf32>, vector<16x16xf32> -> vector<16x16xf32>
    %c0_7 = arith.constant 0 : index
    %c0_8 = arith.constant 0 : index
    %c0_9 = arith.constant 0 : index
    %7 = vector.load %arg5[%c0_7, %c0_8, %c0_9] : memref<1x64x16xf32, #tpu.memory_space<vmem>>, vector<1x16x16xf32>
    %8 = vector.shape_cast %7 : vector<1x16x16xf32> to vector<16x16xf32>
    %9 = vector.shape_cast %6 : vector<16x16xf32> to vector<1x16x16xf32>
    tpu.vector_store %arg5[%c0_7, %c0_8, %c0_9], %9 {strides = array<i32>} : memref<1x64x16xf32, #tpu.memory_space<vmem>>, vector<1x16x16xf32>,
    %10 = vector.extract_strided_slice %3 {offsets = [8, 0], sizes = [8, 16], strides = [1, 1]} : vector<32x16xf32> to vector<8x16xf32>
    %c0_10 = arith.constant 0 : index
    %c0_11 = arith.constant 0 : index
    %11 = vector.load %arg3[%c0_10, %c0_11] : memref<16x8xf32, #tpu.memory_space<vmem>>, vector<16x8xf32>
    %cst_12 = arith.constant dense<0.000000e+00> : vector<16x16xf32>
    %12 = tpu.matmul %11, %10, %cst_12 {dimension_numbers = #tpu.dot_dimension_numbers<[1], [0], [0], [1], [0, 0, 1, 1], [], []>} : vector<16x8xf32>, vector<8x16xf32>, vector<16x16xf32> -> vector<16x16xf32>
    %c0_13 = arith.constant 0 : index
    %c16 = arith.constant 16 : index
    %c0_14 = arith.constant 0 : index
    %13 = vector.load %arg5[%c0_13, %c16, %c0_14] : memref<1x64x16xf32, #tpu.memory_space<vmem>>, vector<1x16x16xf32>
    %14 = vector.shape_cast %13 : vector<1x16x16xf32> to vector<16x16xf32>
    %15 = vector.shape_cast %12 : vector<16x16xf32> to vector<1x16x16xf32>
    tpu.vector_store %arg5[%c0_13, %c16, %c0_14], %15 {strides = array<i32>} : memref<1x64x16xf32, #tpu.memory_space<vmem>>, vector<1x16x16xf32>,
    %16 = vector.extract_strided_slice %3 {offsets = [16, 0], sizes = [8, 16], strides = [1, 1]} : vector<32x16xf32> to vector<8x16xf32>
    %c0_15 = arith.constant 0 : index
    %c0_16 = arith.constant 0 : index
    %17 = vector.load %arg3[%c0_15, %c0_16] : memref<16x8xf32, #tpu.memory_space<vmem>>, vector<16x8xf32>
    %cst_17 = arith.constant dense<0.000000e+00> : vector<16x16xf32>
    %18 = tpu.matmul %17, %16, %cst_17 {dimension_numbers = #tpu.dot_dimension_numbers<[1], [0], [0], [1], [0, 0, 1, 1], [], []>} : vector<16x8xf32>, vector<8x16xf32>, vector<16x16xf32> -> vector<16x16xf32>
    %c0_18 = arith.constant 0 : index
    %c32 = arith.constant 32 : index
    %c0_19 = arith.constant 0 : index
    %19 = vector.load %arg5[%c0_18, %c32, %c0_19] : memref<1x64x16xf32, #tpu.memory_space<vmem>>, vector<1x16x16xf32>
    %20 = vector.shape_cast %19 : vector<1x16x16xf32> to vector<16x16xf32>
    %21 = vector.shape_cast %18 : vector<16x16xf32> to vector<1x16x16xf32>
    tpu.vector_store %arg5[%c0_18, %c32, %c0_19], %21 {strides = array<i32>} : memref<1x64x16xf32, #tpu.memory_space<vmem>>, vector<1x16x16xf32>,
    %22 = vector.extract_strided_slice %3 {offsets = [24, 0], sizes = [8, 16], strides = [1, 1]} : vector<32x16xf32> to vector<8x16xf32>
    %c0_20 = arith.constant 0 : index
    %c0_21 = arith.constant 0 : index
    %23 = vector.load %arg3[%c0_20, %c0_21] : memref<16x8xf32, #tpu.memory_space<vmem>>, vector<16x8xf32>
    %cst_22 = arith.constant dense<0.000000e+00> : vector<16x16xf32>
    %24 = tpu.matmul %23, %22, %cst_22 {dimension_numbers = #tpu.dot_dimension_numbers<[1], [0], [0], [1], [0, 0, 1, 1], [], []>} : vector<16x8xf32>, vector<8x16xf32>, vector<16x16xf32> -> vector<16x16xf32>
    %c0_23 = arith.constant 0 : index
    %c48 = arith.constant 48 : index
    %c0_24 = arith.constant 0 : index
    %25 = vector.load %arg5[%c0_23, %c48, %c0_24] : memref<1x64x16xf32, #tpu.memory_space<vmem>>, vector<1x16x16xf32>
    %26 = vector.shape_cast %25 : vector<1x16x16xf32> to vector<16x16xf32>
    %27 = vector.shape_cast %24 : vector<16x16xf32> to vector<1x16x16xf32>
    tpu.vector_store %arg5[%c0_23, %c48, %c0_24], %27 {strides = array<i32>} : memref<1x64x16xf32, #tpu.memory_space<vmem>>, vector<1x16x16xf32>,
    return
  }
  func.func @transform_0(%arg0: i32, %arg1: i32) -> (i32, i32, i32) {
    %c0_i32 = arith.constant 0 : i32
    %c0_i32_0 = arith.constant 0 : i32
    return %arg0, %arg1, %c0_i32 : i32, i32, i32
  }
  func.func @transform_1(%arg0: i32, %arg1: i32) -> (i32, i32) {
    %c0_i32 = arith.constant 0 : i32
    %c0_i32_0 = arith.constant 0 : i32
    %c0_i32_1 = arith.constant 0 : i32
    return %c0_i32, %c0_i32_0 : i32, i32
  }
  func.func @transform_2(%arg0: i32, %arg1: i32) -> (i32, i32) {
    %c0_i32 = arith.constant 0 : i32
    %c0_i32_0 = arith.constant 0 : i32
    %c0_i32_1 = arith.constant 0 : i32
    return %c0_i32, %c0_i32_0 : i32, i32
  }
  func.func @transform_3(%arg0: i32, %arg1: i32) -> (i32, i32, i32) {
    %c0_i32 = arith.constant 0 : i32
    %c0_i32_0 = arith.constant 0 : i32
    return %arg0, %arg1, %c0_i32 : i32, i32, i32
  }
}

</mosaic_0001>

<llo_original>
// kernel: tpu_custom_call.1
$region0: #{tpu_custom_call.1}
  #allocation0 [shape = 'u32[]', space=smem, size = 0x4, offset = 0x4, fixed_abs, tag = 'smem constant byte address 0x4 - core index']
  #allocation1 [shape = 'u32[144,128]{1,0:T(1,128)}', space=vmem, size = 0x12000, scoped, tag = 'internal scratch']
  %s0 = inlined_call_operand.vmem [shape: f32[2,32,8], index: 0, kind: input, shape index: {}]
  %s1 = inlined_call_operand.vmem [shape: f32[16,8], index: 1, kind: input, shape index: {}]
  %s2 = inlined_call_operand.vmem [shape: f32[8,16], index: 2, kind: input, shape index: {}]
  %s3 = inlined_call_operand.vmem [shape: f32[2,64,16], index: 3, kind: output, shape index: {}]
  %s4 = sld [smem:[#allocation0]]
  $region45: #{tpu_custom_call.1} parent=0
    _
  %s6 = ssub.s32 1, %s4
  %s7 = scalar_select 0, %s6, %s4
  loop: start=0, step=1, limit=4
  $region2: #{tpu_custom_call.1} parent=0 // loop_pre_header
    _
  $region3: #{tpu_custom_call.1} parent=0 // loop_header
    %s9 = sphi 0, %s13
    %p10 = scmp.ge.s32.totalorder %s9, 4
    %s16 = sphi 0, %s28
    %s17 = sphi 0, %s24
    %s18 = sphi 0, %s16
    %s19 = sphi 0, %s17
    %s20 = sphi 0, %s18
    %s21 = sphi 0, %s19
    %s33 = sphi 0, %s35
    %s36 = sphi 0, %s33
    %s37 = sphi 0, %s36
    %s53 = sphi 0, %s37
    %s57 = sphi 0, %s57
    %s59 = sphi 0, %s57
    %s60 = sphi 0, %s59
    %s74 = sphi 0, %s60
    %s78 = sphi 0, %s78
    %s80 = sphi 0, %s78
    %s81 = sphi 0, %s80
    %s95 = sphi 0, %s81
    %s103 = sphi 0, %s105
    %s106 = sphi 0, %s103
    %s107 = sphi 0, %s106
    %s123 = sphi 0, %s107
  $region4: #{tpu_custom_call.1} parent=0 // loop_header_branch
    %12 = sbr.rel (%p10) target = $region8
  $region5: #{tpu_custom_call.1} parent=0 // loop_body
    %s14 = ssub.s32 %s9, 1
    %s15 = ssub.s32 %s9, 2
    %s22 = sadd.s32 1, %s17
    %p23 = scmp.ge.s32.totalorder %s22, 1
    %s24 = scalar_select %p23, 0, %s22
    %s25 = sadd.s32 1, %s16
    %s26 = scalar_select %p23, %s25, %s16
    %p27 = scmp.ge.s32.totalorder %s26, 2
    %s28 = scalar_select %p27, 0, %s26
    %s29 = ssub.s32 %s16, %s28
    %s30 = ssub.s32 %s17, %s24
    %s31 = sor.u32 %s29, %s30
    %p32 = scmp.eq.s32.totalorder %s31, 0
    %s34 = sadd.s32 %s33, 1
    %s35 = scalar_select %p32, %s33, %s34
    %p38 = pneg %p32
    %p39 = scmp.eq.s32.totalorder %s9, 1
    %p40 = por %p38, %p39
    %p41 = scmp.ne.s32.totalorder %s33, %s36
    %p42 = scmp.eq.s32.totalorder %s9, 0
    %p43 = por %p41, %p42
    %p44 = scmp.ne.s32.totalorder %s33, %s36
    %p45 = scmp.eq.s32.totalorder %s14, 1
    %p46 = por %p44, %p45
    %p47 = scmp.ne.s32.totalorder %s36, %s37
    %p48 = scmp.eq.s32.totalorder %s14, 0
    %p49 = por %p47, %p48
    %p50 = scmp.ne.s32.totalorder %s36, %s37
    %p51 = scmp.eq.s32.totalorder %s15, 1
    %p52 = por %p50, %p51
    %p54 = scmp.ne.s32.totalorder %s37, %s53
    %p55 = scmp.eq.s32.totalorder %s15, 0
    %p56 = por %p54, %p55
    %s58 = sadd.s32 %s57, 1
    %p61 = scmp.eq.s32.totalorder %s9, 1
    %p62 = scmp.ne.s32.totalorder %s57, %s59
    %p63 = scmp.eq.s32.totalorder %s9, 0
    %p64 = por %p62, %p63
    %p65 = scmp.ne.s32.totalorder %s57, %s59
    %p66 = scmp.eq.s32.totalorder %s14, 1
    %p67 = por %p65, %p66
    %p68 = scmp.ne.s32.totalorder %s59, %s60
    %p69 = scmp.eq.s32.totalorder %s14, 0
    %p70 = por %p68, %p69
    %p71 = scmp.ne.s32.totalorder %s59, %s60
    %p72 = scmp.eq.s32.totalorder %s15, 1
    %p73 = por %p71, %p72
    %p75 = scmp.ne.s32.totalorder %s60, %s74
    %p76 = scmp.eq.s32.totalorder %s15, 0
    %p77 = por %p75, %p76
    %s79 = sadd.s32 %s78, 1
    %p82 = scmp.eq.s32.totalorder %s9, 1
    %p83 = scmp.ne.s32.totalorder %s78, %s80
    %p84 = scmp.eq.s32.totalorder %s9, 0
    %p85 = por %p83, %p84
    %p86 = scmp.ne.s32.totalorder %s78, %s80
    %p87 = scmp.eq.s32.totalorder %s14, 1
    %p88 = por %p86, %p87
    %p89 = scmp.ne.s32.totalorder %s80, %s81
    %p90 = scmp.eq.s32.totalorder %s14, 0
    %p91 = por %p89, %p90
    %p92 = scmp.ne.s32.totalorder %s80, %s81
    %p93 = scmp.eq.s32.totalorder %s15, 1
    %p94 = por %p92, %p93
    %p96 = scmp.ne.s32.totalorder %s81, %s95
    %p97 = scmp.eq.s32.totalorder %s15, 0
    %p98 = por %p96, %p97
    %s99 = ssub.s32 %s16, %s28
    %s100 = ssub.s32 %s17, %s24
    %s101 = sor.u32 %s99, %s100
    %p102 = scmp.eq.s32.totalorder %s101, 0
    %s104 = sadd.s32 %s103, 1
    %s105 = scalar_select %p102, %s103, %s104
    %p108 = pneg %p102
    %p109 = scmp.eq.s32.totalorder %s9, 1
    %p110 = por %p108, %p109
    %p111 = scmp.ne.s32.totalorder %s103, %s106
    %p112 = scmp.eq.s32.totalorder %s9, 0
    %p113 = por %p111, %p112
    %p114 = scmp.ne.s32.totalorder %s103, %s106
    %p115 = scmp.eq.s32.totalorder %s14, 1
    %p116 = por %p114, %p115
    %p117 = scmp.ne.s32.totalorder %s106, %s107
    %p118 = scmp.eq.s32.totalorder %s14, 0
    %p119 = por %p117, %p118
    %p120 = scmp.ne.s32.totalorder %s106, %s107
    %p121 = scmp.eq.s32.totalorder %s15, 1
    %p122 = por %p120, %p121
    %p124 = scmp.ne.s32.totalorder %s107, %s123
    %p125 = scmp.eq.s32.totalorder %s15, 0
    %p126 = por %p124, %p125
    %p127 = scmp.le.s32.totalorder 1, %s9
    %p128 = scmp.lt.s32.totalorder %s9, 3
    %p129 = pnand %p127, %p128
    %p130 = pneg %p129
    // Predicated region
    $region9: #{tpu_custom_call.1} parent=5 // pred_check
      _
    $region10: #{tpu_custom_call.1} parent=5 // pred_check_branch
      %132 = sbr.rel (%p129) target = $region12
    $region11: #{tpu_custom_call.1} parent=5 // pred_region
      %s133 = ssub.s32 %s9, 1
      // Predicated region
      $region13: #{tpu_custom_call.1} parent=11 // pred_check
        %p134 = pneg %p70
      $region14: #{tpu_custom_call.1} parent=11 // pred_check_branch
        %136 = sbr.rel (%p134) target = $region16
      $region15: #{tpu_custom_call.1} parent=11 // pred_region
        _
      $region16: #{tpu_custom_call.1} parent=11 // pred_fallthru
        _
      // Predicated region
      $region17: #{tpu_custom_call.1} parent=11 // pred_check
        %p137 = pneg %p91
      $region18: #{tpu_custom_call.1} parent=11 // pred_check_branch
        %139 = sbr.rel (%p137) target = $region20
      $region19: #{tpu_custom_call.1} parent=11 // pred_region
        _
      $region20: #{tpu_custom_call.1} parent=11 // pred_fallthru
        _
    $region12: #{tpu_custom_call.1} parent=5 // pred_fallthru
      _
    %p140 = scmp.lt.s32.totalorder %s9, 2
    // Predicated region
    $region21: #{tpu_custom_call.1} parent=5 // pred_check
      %p141 = pneg %p140
    $region22: #{tpu_custom_call.1} parent=5 // pred_check_branch
      %143 = sbr.rel (%p141) target = $region24
    $region23: #{tpu_custom_call.1} parent=5 // pred_region
      // Predicated region
      $region25: #{tpu_custom_call.1} parent=23 // pred_check
        %p144 = pneg %p43
      $region26: #{tpu_custom_call.1} parent=23 // pred_check_branch
        %146 = sbr.rel (%p144) target = $region28
      $region27: #{tpu_custom_call.1} parent=23 // pred_region
        %s147 = smul.u32 4, %s17
        %p148 = scmp.lt.s32.totalorder %s16, 1
        %s149 = scalar_select %p148, %s16, 1
        %p150 = scmp.lt.s32.totalorder %s147, 3
        %s151 = scalar_select %p150, %s147, 3
        %s152 = smul.addr %s149, 4
        %s153 = sadd.s32 %s151, %s152
        %s154 = smul.addr %s153, 8
        %s155 = scalar_lea.vmem %s0, %s154
        %s156 = smul.u32 4, %s17
      $region28: #{tpu_custom_call.1} parent=23 // pred_fallthru
        _
    $region24: #{tpu_custom_call.1} parent=5 // pred_fallthru
      _
    %p157 = scmp.le.s32.totalorder 1, %s9
    %p158 = scmp.lt.s32.totalorder %s9, 3
    %p159 = pnand %p157, %p158
    %p160 = pneg %p159
    // Predicated region
    $region29: #{tpu_custom_call.1} parent=5 // pred_check
      _
    $region30: #{tpu_custom_call.1} parent=5 // pred_check_branch
      %162 = sbr.rel (%p159) target = $region32
    $region31: #{tpu_custom_call.1} parent=5 // pred_region
      %s163 = ssub.s32 %s9, 1
      %s164 = smul.u32 4, %s19
      %p165 = scmp.lt.s32.totalorder %s18, 1
      %s166 = scalar_select %p165, %s18, 1
      %p167 = scmp.lt.s32.totalorder %s164, 3
      %s168 = scalar_select %p167, %s164, 3
      %s169 = smul.addr %s166, 4
      %s170 = sadd.s32 %s168, %s169
      %s171 = smul.addr %s170, 8
      %s172 = scalar_lea.vmem %s0, %s171
      %p173 = pneg %p49
      %p174 = pneg %p46
      %p175 = pneg %p70
      %p176 = pneg %p67
      %p177 = pneg %p91
      %p178 = pneg %p88
      %p179 = pneg %p119
      %p180 = pneg %p116
      %s181 = smul.u32 8, %s19
      %p182 = scmp.lt.s32.totalorder %s18, 1
      %s183 = scalar_select %p182, %s18, 1
      %p184 = scmp.lt.s32.totalorder %s181, 7
      %s185 = scalar_select %p184, %s181, 7
      %s186 = smul.addr %s183, 8
      %s187 = sadd.s32 %s185, %s186
      %s188 = smul.addr %s187, 8
      %s189 = scalar_lea.vmem %s3, %s188
      %s190 = smul.u32 4, %s19
      %p191 = scmp.lt.s32.totalorder %s18, 1
      %s192 = scalar_select %p191, %s18, 1
      %p193 = scmp.lt.s32.totalorder %s190, 3
      %s194 = scalar_select %p193, %s190, 3
      %s195 = smul.addr %s192, 4
      %s196 = sadd.s32 %s194, %s195
      %s197 = smul.addr %s196, 8
      %s198 = scalar_lea.vmem %s0, %s197
      %s199 = smul.u32 4, %s19
      %s200 = smul.u32 8, %s19
      %p201 = scmp.lt.s32.totalorder %s18, 1
      %s202 = scalar_select %p201, %s18, 1
      %p203 = scmp.lt.s32.totalorder %s200, 7
      %s204 = scalar_select %p203, %s200, 7
      %s205 = smul.addr %s202, 8
      %s206 = sadd.s32 %s204, %s205
      %s207 = smul.addr %s206, 8
      %s208 = scalar_lea.vmem %s3, %s207
      %s209 = smul.u32 8, %s19
      %v210 = vld [vmem:[%s198] sm:$0xff]
      %v211 = vld [vmem:[%s198 + $0x8] sm:$0xff]
      %v212 = vld [vmem:[%s198 + $0x10] sm:$0xff]
      %v213 = vld [vmem:[%s198 + $0x18] sm:$0xff]
      %v214 = vld [vmem:[%s2] sm:$0xff]
      %vm215 = vcmask 64512
      %v217 = vsel %vm215, %v210, 0
      %v220 = vsel %vm215, %v211, 0
      %v223 = vsel %vm215, %v212, 0
      %v226 = vsel %vm215, %v213, 0
      %228 = vmatprep.subr.mxu0 0.0
      %229 = vmatpush1.msra.mxu0 %v214
      %230 = vmatprep.subr.mxu0 0.0
      %231 = vmatpush1.msra.mxu0 0.0
      %232 = vmatprep.subr.mxu0 0.0
      %233 = vmatpush1.msra.mxu0 0.0
      %234 = vmatprep.subr.mxu0 0.0
      %235 = vmatpush1.msra.mxu0 0.0
      %236 = vmatprep.subr.mxu0 0.0
      %237 = vmatpush1.msra.mxu0 0.0
      %238 = vmatprep.subr.mxu0 0.0
      %239 = vmatpush1.msra.mxu0 0.0
      %240 = vmatprep.subr.mxu0 0.0
      %241 = vmatpush1.msra.mxu0 0.0
      %242 = vmatprep.subr.mxu0 0.0
      %243 = vmatpush1.msra.mxu0 0.0
      %244 = vmatprep.subr.mxu0 0.0
      %245 = vmatpush1.msra.mxu0 0.0
      %246 = vmatprep.subr.mxu0 0.0
      %247 = vmatpush1.msra.mxu0 0.0
      %248 = vmatprep.subr.mxu0 0.0
      %249 = vmatpush1.msra.mxu0 0.0
      %250 = vmatprep.subr.mxu0 0.0
      %251 = vmatpush1.msra.mxu0 0.0
      %252 = vmatprep.subr.mxu0 0.0
      %253 = vmatpush1.msra.mxu0 0.0
      %254 = vmatprep.subr.mxu0 0.0
      %255 = vmatpush1.msra.mxu0 0.0
      %256 = vmatprep.subr.mxu0 0.0
      %257 = vmatpush1.msra.mxu0 0.0
      %258 = vmatprep.subr.mxu0 0.0
      %259 = vmatpush1.msra.mxu0 0.0
      %260 = vmatprep.subr.mxu0 0.0
      %261 = vmatpush1.msra.mxu0 0.0
      %262 = vmatprep.subr.mxu0 0.0
      %263 = vmatpush1.msra.mxu0 0.0
      %264 = vmatprep.subr.mxu0 0.0
      %265 = vmatpush1.msra.mxu0 0.0
      %266 = vmatprep.subr.mxu0 0.0
      %267 = vmatpush1.msra.mxu0 0.0
      %268 = vmatprep.subr.mxu0 0.0
      %269 = vmatpush1.msra.mxu0 0.0
      %270 = vmatprep.subr.mxu0 0.0
      %271 = vmatpush1.msra.mxu0 0.0
      %272 = vmatprep.subr.mxu0 0.0
      %273 = vmatpush1.msra.mxu0 0.0
      %274 = vmatprep.subr.mxu0 0.0
      %275 = vmatpush1.msra.mxu0 0.0
      %276 = vmatprep.subr.mxu0 0.0
      %277 = vmatpush1.msra.mxu0 0.0
      %278 = vmatprep.subr.mxu0 0.0
      %279 = vmatpush1.msra.mxu0 0.0
      %280 = vmatprep.subr.mxu0 0.0
      %281 = vmatpush1.msra.mxu0 0.0
      %282 = vmatprep.subr.mxu0 0.0
      %283 = vmatpush1.msra.mxu0 0.0
      %284 = vmatprep.subr.mxu0 0.0
      %285 = vmatpush1.msra.mxu0 0.0
      %286 = vmatprep.subr.mxu0 0.0
      %287 = vmatpush1.msra.mxu0 0.0
      %288 = vmatprep.subr.mxu0 0.0
      %289 = vmatpush1.msra.mxu0 0.0
      %290 = vmatprep.subr.mxu0 0.0
      %291 = vmatpush1.msra.mxu0 0.0
      %292 = vmatprep.mubr.f32.mxu0 0.0
      %293 = vmatmul.mubr.f32.gmra.mrb[0].mxu0 %v217
      %v294 = vpop.f32.mrb[0].mxu0
      %v295 = vadd.f32 0.0, %v294
      %v296 = vpop.f32.mrb[0].mxu0
      %297 = vmatprep.mubr.f32.mxu0 0.0
      %298 = vmatmul.mubr.f32.gmra.mrb[0].mxu0 %v220
      %v299 = vpop.f32.mrb[0].mxu0
      %v300 = vadd.f32 0.0, %v299
      %v301 = vpop.f32.mrb[0].mxu0
      %302 = vmatprep.mubr.f32.mxu0 0.0
      %303 = vmatmul.mubr.f32.gmra.mrb[0].mxu0 %v223
      %v304 = vpop.f32.mrb[0].mxu0
      %v305 = vadd.f32 0.0, %v304
      %v306 = vpop.f32.mrb[0].mxu0
      %307 = vmatprep.mubr.f32.mxu0 0.0
      %308 = vmatmul.mubr.f32.gmra.mrb[0].mxu0 %v226
      %v309 = vpop.f32.mrb[0].mxu0
      %v310 = vadd.f32 0.0, %v309
      %v311 = vpop.f32.mrb[0].mxu0
      %312 = vdwg.mxu0
      %v313 = vld [vmem:[%s1] sm:$0xff]
      %v314 = vld [vmem:[%s1 + $0x8] sm:$0xff]
      %v316 = vsel %vm215, %v313, 0
      %v319 = vsel %vm215, %v314, 0
      %321 = vmatprep.subr.mxu0 0.0
      %322 = vmatpush1.msra.mxu0 %v295
      %323 = vmatprep.subr.mxu0 0.0
      %324 = vmatpush1.msra.mxu0 0.0
      %325 = vmatprep.subr.mxu0 0.0
      %326 = vmatpush1.msra.mxu0 0.0
      %327 = vmatprep.subr.mxu0 0.0
      %328 = vmatpush1.msra.mxu0 0.0
      %329 = vmatprep.subr.mxu0 0.0
      %330 = vmatpush1.msra.mxu0 0.0
      %331 = vmatprep.subr.mxu0 0.0
      %332 = vmatpush1.msra.mxu0 0.0
      %333 = vmatprep.subr.mxu0 0.0
      %334 = vmatpush1.msra.mxu0 0.0
      %335 = vmatprep.subr.mxu0 0.0
      %336 = vmatpush1.msra.mxu0 0.0
      %337 = vmatprep.subr.mxu0 0.0
      %338 = vmatpush1.msra.mxu0 0.0
      %339 = vmatprep.subr.mxu0 0.0
      %340 = vmatpush1.msra.mxu0 0.0
      %341 = vmatprep.subr.mxu0 0.0
      %342 = vmatpush1.msra.mxu0 0.0
      %343 = vmatprep.subr.mxu0 0.0
      %344 = vmatpush1.msra.mxu0 0.0
      %345 = vmatprep.subr.mxu0 0.0
      %346 = vmatpush1.msra.mxu0 0.0
      %347 = vmatprep.subr.mxu0 0.0
      %348 = vmatpush1.msra.mxu0 0.0
      %349 = vmatprep.subr.mxu0 0.0
      %350 = vmatpush1.msra.mxu0 0.0
      %351 = vmatprep.subr.mxu0 0.0
      %352 = vmatpush1.msra.mxu0 0.0
      %353 = vmatprep.subr.mxu0 0.0
      %354 = vmatpush1.msra.mxu0 0.0
      %355 = vmatprep.subr.mxu0 0.0
      %356 = vmatpush1.msra.mxu0 0.0
      %357 = vmatprep.subr.mxu0 0.0
      %358 = vmatpush1.msra.mxu0 0.0
      %359 = vmatprep.subr.mxu0 0.0
      %360 = vmatpush1.msra.mxu0 0.0
      %361 = vmatprep.subr.mxu0 0.0
      %362 = vmatpush1.msra.mxu0 0.0
      %363 = vmatprep.subr.mxu0 0.0
      %364 = vmatpush1.msra.mxu0 0.0
      %365 = vmatprep.subr.mxu0 0.0
      %366 = vmatpush1.msra.mxu0 0.0
      %367 = vmatprep.subr.mxu0 0.0
      %368 = vmatpush1.msra.mxu0 0.0
      %369 = vmatprep.subr.mxu0 0.0
      %370 = vmatpush1.msra.mxu0 0.0
      %371 = vmatprep.subr.mxu0 0.0
      %372 = vmatpush1.msra.mxu0 0.0
      %373 = vmatprep.subr.mxu0 0.0
      %374 = vmatpush1.msra.mxu0 0.0
      %375 = vmatprep.subr.mxu0 0.0
      %376 = vmatpush1.msra.mxu0 0.0
      %377 = vmatprep.subr.mxu0 0.0
      %378 = vmatpush1.msra.mxu0 0.0
      %379 = vmatprep.subr.mxu0 0.0
      %380 = vmatpush1.msra.mxu0 0.0
      %381 = vmatprep.subr.mxu0 0.0
      %382 = vmatpush1.msra.mxu0 0.0
      %383 = vmatprep.subr.mxu0 0.0
      %384 = vmatpush1.msra.mxu0 0.0
      %385 = vmatprep.mubr.f32.mxu0 0.0
      %386 = vmatmul.mubr.f32.gmra.mrb[0].mxu0 %v316
      %v387 = vpop.f32.mrb[0].mxu0
      %v388 = vadd.f32 0.0, %v387
      %v389 = vpop.f32.mrb[0].mxu0
      %390 = vmatprep.mubr.f32.mxu0 0.0
      %391 = vmatmul.mubr.f32.gmra.mrb[0].mxu0 %v319
      %v392 = vpop.f32.mrb[0].mxu0
      %v393 = vadd.f32 0.0, %v392
      %v394 = vpop.f32.mrb[0].mxu0
      %395 = vdwg.mxu0
      %vm396 = vcmask 130048
      %397 = vst.msk [vmem:[%s208] sm:$0xff] %vm396, %v388
      %398 = vst.msk [vmem:[%s208 + $0x8] sm:$0xff] %vm396, %v393
      %v399 = vld [vmem:[%s1] sm:$0xff]
      %v400 = vld [vmem:[%s1 + $0x8] sm:$0xff]
      %v402 = vsel %vm215, %v399, 0
      %v405 = vsel %vm215, %v400, 0
      %407 = vmatprep.subr.mxu0 0.0
      %408 = vmatpush1.msra.mxu0 %v300
      %409 = vmatprep.subr.mxu0 0.0
      %410 = vmatpush1.msra.mxu0 0.0
      %411 = vmatprep.subr.mxu0 0.0
      %412 = vmatpush1.msra.mxu0 0.0
      %413 = vmatprep.subr.mxu0 0.0
      %414 = vmatpush1.msra.mxu0 0.0
      %415 = vmatprep.subr.mxu0 0.0
      %416 = vmatpush1.msra.mxu0 0.0
      %417 = vmatprep.subr.mxu0 0.0
      %418 = vmatpush1.msra.mxu0 0.0
      %419 = vmatprep.subr.mxu0 0.0
      %420 = vmatpush1.msra.mxu0 0.0
      %421 = vmatprep.subr.mxu0 0.0
      %422 = vmatpush1.msra.mxu0 0.0
      %423 = vmatprep.subr.mxu0 0.0
      %424 = vmatpush1.msra.mxu0 0.0
      %425 = vmatprep.subr.mxu0 0.0
      %426 = vmatpush1.msra.mxu0 0.0
      %427 = vmatprep.subr.mxu0 0.0
      %428 = vmatpush1.msra.mxu0 0.0
      %429 = vmatprep.subr.mxu0 0.0
      %430 = vmatpush1.msra.mxu0 0.0
      %431 = vmatprep.subr.mxu0 0.0
      %432 = vmatpush1.msra.mxu0 0.0
      %433 = vmatprep.subr.mxu0 0.0
      %434 = vmatpush1.msra.mxu0 0.0
      %435 = vmatprep.subr.mxu0 0.0
      %436 = vmatpush1.msra.mxu0 0.0
      %437 = vmatprep.subr.mxu0 0.0
      %438 = vmatpush1.msra.mxu0 0.0
      %439 = vmatprep.subr.mxu0 0.0
      %440 = vmatpush1.msra.mxu0 0.0
      %441 = vmatprep.subr.mxu0 0.0
      %442 = vmatpush1.msra.mxu0 0.0
      %443 = vmatprep.subr.mxu0 0.0
      %444 = vmatpush1.msra.mxu0 0.0
      %445 = vmatprep.subr.mxu0 0.0
      %446 = vmatpush1.msra.mxu0 0.0
      %447 = vmatprep.subr.mxu0 0.0
      %448 = vmatpush1.msra.mxu0 0.0
      %449 = vmatprep.subr.mxu0 0.0
      %450 = vmatpush1.msra.mxu0 0.0
      %451 = vmatprep.subr.mxu0 0.0
      %452 = vmatpush1.msra.mxu0 0.0
      %453 = vmatprep.subr.mxu0 0.0
      %454 = vmatpush1.msra.mxu0 0.0
      %455 = vmatprep.subr.mxu0 0.0
      %456 = vmatpush1.msra.mxu0 0.0
      %457 = vmatprep.subr.mxu0 0.0
      %458 = vmatpush1.msra.mxu0 0.0
      %459 = vmatprep.subr.mxu0 0.0
      %460 = vmatpush1.msra.mxu0 0.0
      %461 = vmatprep.subr.mxu0 0.0
      %462 = vmatpush1.msra.mxu0 0.0
      %463 = vmatprep.subr.mxu0 0.0
      %464 = vmatpush1.msra.mxu0 0.0
      %465 = vmatprep.subr.mxu0 0.0
      %466 = vmatpush1.msra.mxu0 0.0
      %467 = vmatprep.subr.mxu0 0.0
      %468 = vmatpush1.msra.mxu0 0.0
      %469 = vmatprep.subr.mxu0 0.0
      %470 = vmatpush1.msra.mxu0 0.0
      %471 = vmatprep.mubr.f32.mxu0 0.0
      %472 = vmatmul.mubr.f32.gmra.mrb[0].mxu0 %v402
      %v473 = vpop.f32.mrb[0].mxu0
      %v474 = vadd.f32 0.0, %v473
      %v475 = vpop.f32.mrb[0].mxu0
      %476 = vmatprep.mubr.f32.mxu0 0.0
      %477 = vmatmul.mubr.f32.gmra.mrb[0].mxu0 %v405
      %v478 = vpop.f32.mrb[0].mxu0
      %v479 = vadd.f32 0.0, %v478
      %v480 = vpop.f32.mrb[0].mxu0
      %481 = vdwg.mxu0
      %482 = vst.msk [vmem:[%s208 + $0x10] sm:$0xff] %vm396, %v474
      %483 = vst.msk [vmem:[%s208 + $0x18] sm:$0xff] %vm396, %v479
      %v484 = vld [vmem:[%s1] sm:$0xff]
      %v485 = vld [vmem:[%s1 + $0x8] sm:$0xff]
      %v487 = vsel %vm215, %v484, 0
      %v490 = vsel %vm215, %v485, 0
      %492 = vmatprep.subr.mxu0 0.0
      %493 = vmatpush1.msra.mxu0 %v305
      %494 = vmatprep.subr.mxu0 0.0
      %495 = vmatpush1.msra.mxu0 0.0
      %496 = vmatprep.subr.mxu0 0.0
      %497 = vmatpush1.msra.mxu0 0.0
      %498 = vmatprep.subr.mxu0 0.0
      %499 = vmatpush1.msra.mxu0 0.0
      %500 = vmatprep.subr.mxu0 0.0
      %501 = vmatpush1.msra.mxu0 0.0
      %502 = vmatprep.subr.mxu0 0.0
      %503 = vmatpush1.msra.mxu0 0.0
      %504 = vmatprep.subr.mxu0 0.0
      %505 = vmatpush1.msra.mxu0 0.0
      %506 = vmatprep.subr.mxu0 0.0
      %507 = vmatpush1.msra.mxu0 0.0
      %508 = vmatprep.subr.mxu0 0.0
      %509 = vmatpush1.msra.mxu0 0.0
      %510 = vmatprep.subr.mxu0 0.0
      %511 = vmatpush1.msra.mxu0 0.0
      %512 = vmatprep.subr.mxu0 0.0
      %513 = vmatpush1.msra.mxu0 0.0
      %514 = vmatprep.subr.mxu0 0.0
      %515 = vmatpush1.msra.mxu0 0.0
      %516 = vmatprep.subr.mxu0 0.0
      %517 = vmatpush1.msra.mxu0 0.0
      %518 = vmatprep.subr.mxu0 0.0
      %519 = vmatpush1.msra.mxu0 0.0
      %520 = vmatprep.subr.mxu0 0.0
      %521 = vmatpush1.msra.mxu0 0.0
      %522 = vmatprep.subr.mxu0 0.0
      %523 = vmatpush1.msra.mxu0 0.0
      %524 = vmatprep.subr.mxu0 0.0
      %525 = vmatpush1.msra.mxu0 0.0
      %526 = vmatprep.subr.mxu0 0.0
      %527 = vmatpush1.msra.mxu0 0.0
      %528 = vmatprep.subr.mxu0 0.0
      %529 = vmatpush1.msra.mxu0 0.0
      %530 = vmatprep.subr.mxu0 0.0
      %531 = vmatpush1.msra.mxu0 0.0
      %532 = vmatprep.subr.mxu0 0.0
      %533 = vmatpush1.msra.mxu0 0.0
      %534 = vmatprep.subr.mxu0 0.0
      %535 = vmatpush1.msra.mxu0 0.0
      %536 = vmatprep.subr.mxu0 0.0
      %537 = vmatpush1.msra.mxu0 0.0
      %538 = vmatprep.subr.mxu0 0.0
      %539 = vmatpush1.msra.mxu0 0.0
      %540 = vmatprep.subr.mxu0 0.0
      %541 = vmatpush1.msra.mxu0 0.0
      %542 = vmatprep.subr.mxu0 0.0
      %543 = vmatpush1.msra.mxu0 0.0
      %544 = vmatprep.subr.mxu0 0.0
      %545 = vmatpush1.msra.mxu0 0.0
      %546 = vmatprep.subr.mxu0 0.0
      %547 = vmatpush1.msra.mxu0 0.0
      %548 = vmatprep.subr.mxu0 0.0
      %549 = vmatpush1.msra.mxu0 0.0
      %550 = vmatprep.subr.mxu0 0.0
      %551 = vmatpush1.msra.mxu0 0.0
      %552 = vmatprep.subr.mxu0 0.0
      %553 = vmatpush1.msra.mxu0 0.0
      %554 = vmatprep.subr.mxu0 0.0
      %555 = vmatpush1.msra.mxu0 0.0
      %556 = vmatprep.mubr.f32.mxu0 0.0
      %557 = vmatmul.mubr.f32.gmra.mrb[0].mxu0 %v487
      %v558 = vpop.f32.mrb[0].mxu0
      %v559 = vadd.f32 0.0, %v558
      %v560 = vpop.f32.mrb[0].mxu0
      %561 = vmatprep.mubr.f32.mxu0 0.0
      %562 = vmatmul.mubr.f32.gmra.mrb[0].mxu0 %v490
      %v563 = vpop.f32.mrb[0].mxu0
      %v564 = vadd.f32 0.0, %v563
      %v565 = vpop.f32.mrb[0].mxu0
      %566 = vdwg.mxu0
      %567 = vst.msk [vmem:[%s208 + $0x20] sm:$0xff] %vm396, %v559
      %568 = vst.msk [vmem:[%s208 + $0x28] sm:$0xff] %vm396, %v564
      %v569 = vld [vmem:[%s1] sm:$0xff]
      %v570 = vld [vmem:[%s1 + $0x8] sm:$0xff]
      %v572 = vsel %vm215, %v569, 0
      %v575 = vsel %vm215, %v570, 0
      %577 = vmatprep.subr.mxu0 0.0
      %578 = vmatpush1.msra.mxu0 %v310
      %579 = vmatprep.subr.mxu0 0.0
      %580 = vmatpush1.msra.mxu0 0.0
      %581 = vmatprep.subr.mxu0 0.0
      %582 = vmatpush1.msra.mxu0 0.0
      %583 = vmatprep.subr.mxu0 0.0
      %584 = vmatpush1.msra.mxu0 0.0
      %585 = vmatprep.subr.mxu0 0.0
      %586 = vmatpush1.msra.mxu0 0.0
      %587 = vmatprep.subr.mxu0 0.0
      %588 = vmatpush1.msra.mxu0 0.0
      %589 = vmatprep.subr.mxu0 0.0
      %590 = vmatpush1.msra.mxu0 0.0
      %591 = vmatprep.subr.mxu0 0.0
      %592 = vmatpush1.msra.mxu0 0.0
      %593 = vmatprep.subr.mxu0 0.0
      %594 = vmatpush1.msra.mxu0 0.0
      %595 = vmatprep.subr.mxu0 0.0
      %596 = vmatpush1.msra.mxu0 0.0
      %597 = vmatprep.subr.mxu0 0.0
      %598 = vmatpush1.msra.mxu0 0.0
      %599 = vmatprep.subr.mxu0 0.0
      %600 = vmatpush1.msra.mxu0 0.0
      %601 = vmatprep.subr.mxu0 0.0
      %602 = vmatpush1.msra.mxu0 0.0
      %603 = vmatprep.subr.mxu0 0.0
      %604 = vmatpush1.msra.mxu0 0.0
      %605 = vmatprep.subr.mxu0 0.0
      %606 = vmatpush1.msra.mxu0 0.0
      %607 = vmatprep.subr.mxu0 0.0
      %608 = vmatpush1.msra.mxu0 0.0
      %609 = vmatprep.subr.mxu0 0.0
      %610 = vmatpush1.msra.mxu0 0.0
      %611 = vmatprep.subr.mxu0 0.0
      %612 = vmatpush1.msra.mxu0 0.0
      %613 = vmatprep.subr.mxu0 0.0
      %614 = vmatpush1.msra.mxu0 0.0
      %615 = vmatprep.subr.mxu0 0.0
      %616 = vmatpush1.msra.mxu0 0.0
      %617 = vmatprep.subr.mxu0 0.0
      %618 = vmatpush1.msra.mxu0 0.0
      %619 = vmatprep.subr.mxu0 0.0
      %620 = vmatpush1.msra.mxu0 0.0
      %621 = vmatprep.subr.mxu0 0.0
      %622 = vmatpush1.msra.mxu0 0.0
      %623 = vmatprep.subr.mxu0 0.0
      %624 = vmatpush1.msra.mxu0 0.0
      %625 = vmatprep.subr.mxu0 0.0
      %626 = vmatpush1.msra.mxu0 0.0
      %627 = vmatprep.subr.mxu0 0.0
      %628 = vmatpush1.msra.mxu0 0.0
      %629 = vmatprep.subr.mxu0 0.0
      %630 = vmatpush1.msra.mxu0 0.0
      %631 = vmatprep.subr.mxu0 0.0
      %632 = vmatpush1.msra.mxu0 0.0
      %633 = vmatprep.subr.mxu0 0.0
      %634 = vmatpush1.msra.mxu0 0.0
      %635 = vmatprep.subr.mxu0 0.0
      %636 = vmatpush1.msra.mxu0 0.0
      %637 = vmatprep.subr.mxu0 0.0
      %638 = vmatpush1.msra.mxu0 0.0
      %639 = vmatprep.subr.mxu0 0.0
      %640 = vmatpush1.msra.mxu0 0.0
      %641 = vmatprep.mubr.f32.mxu0 0.0
      %642 = vmatmul.mubr.f32.gmra.mrb[0].mxu0 %v572
      %v643 = vpop.f32.mrb[0].mxu0
      %v644 = vadd.f32 0.0, %v643
      %v645 = vpop.f32.mrb[0].mxu0
      %646 = vmatprep.mubr.f32.mxu0 0.0
      %647 = vmatmul.mubr.f32.gmra.mrb[0].mxu0 %v575
      %v648 = vpop.f32.mrb[0].mxu0
      %v649 = vadd.f32 0.0, %v648
      %v650 = vpop.f32.mrb[0].mxu0
      %651 = vdwg.mxu0
      %652 = vst.msk [vmem:[%s208 + $0x30] sm:$0xff] %vm396, %v644
      %653 = vst.msk [vmem:[%s208 + $0x38] sm:$0xff] %vm396, %v649
      %s654 = smul.u32 8, %s19
      %p655 = scmp.lt.s32.totalorder %s18, 1
      %s656 = scalar_select %p655, %s18, 1
      %p657 = scmp.lt.s32.totalorder %s654, 7
      %s658 = scalar_select %p657, %s654, 7
      %s659 = smul.addr %s656, 8
      %s660 = sadd.s32 %s658, %s659
      %s661 = smul.addr %s660, 8
      %s662 = scalar_lea.vmem %s3, %s661
      // Predicated region
      $region33: #{tpu_custom_call.1} parent=31 // pred_check
        %p663 = pneg %p116
      $region34: #{tpu_custom_call.1} parent=31 // pred_check_branch
        %665 = sbr.rel (%p663) target = $region36
      $region35: #{tpu_custom_call.1} parent=31 // pred_region
        %s666 = smul.u32 8, %s19
      $region36: #{tpu_custom_call.1} parent=31 // pred_fallthru
        _
    $region32: #{tpu_custom_call.1} parent=5 // pred_fallthru
      _
    %p667 = scmp.le.s32.totalorder 2, %s9
    // Predicated region
    $region37: #{tpu_custom_call.1} parent=5 // pred_check
      %p668 = pneg %p667
    $region38: #{tpu_custom_call.1} parent=5 // pred_check_branch
      %670 = sbr.rel (%p668) target = $region40
    $region39: #{tpu_custom_call.1} parent=5 // pred_region
      %s671 = ssub.s32 %s9, 2
      // Predicated region
      $region41: #{tpu_custom_call.1} parent=39 // pred_check
        %p672 = pneg %p122
      $region42: #{tpu_custom_call.1} parent=39 // pred_check_branch
        %674 = sbr.rel (%p672) target = $region44
      $region43: #{tpu_custom_call.1} parent=39 // pred_region
        %s675 = smul.u32 8, %s21
        %p676 = scmp.lt.s32.totalorder %s20, 1
        %s677 = scalar_select %p676, %s20, 1
        %p678 = scmp.lt.s32.totalorder %s675, 7
        %s679 = scalar_select %p678, %s675, 7
        %s680 = smul.addr %s677, 8
        %s681 = sadd.s32 %s679, %s680
        %s682 = smul.addr %s681, 8
        %s683 = scalar_lea.vmem %s3, %s682
      $region44: #{tpu_custom_call.1} parent=39 // pred_fallthru
        _
    $region40: #{tpu_custom_call.1} parent=5 // pred_fallthru
      _
  $region6: #{tpu_custom_call.1} parent=0 // loop_footer
    %s13 = sadd.s32 1, %s9
  $region7: #{tpu_custom_call.1} parent=0 // loop_footer_branch
    %8 = sbr.rel target = $region3
  $region8: #{tpu_custom_call.1} parent=0 // loop_exit
    _

</llo_original>
